<compile_context>
chip_gen: v7x
topology: tpu7x:2x2x1
jax: 0.10.0
libtpu: 0.0.40
codegen_flags: <defaults>
</compile_context>

<pallas_src>
import jax
import jax.numpy as jnp
import numpy as np
from jax.experimental import pallas as pl
from jax.experimental.pallas import tpu as pltpu

# -------- problem sizes (small, consistent with the module) --------
B, S, H = 2, 8, 32          # batch, sequence length, hidden_size
NUM_SEQ_LABELS = 7          # len(Config.SEQUENCE_LABELS)
NUM_GROUP_LABELS = 6        # len(Config.GROUP_LABELS)
NUM_HATE_LABELS = 2         # len(Config.HATE_LABELS)
VOCAB = 64
IGNORE_INDEX = -100
FOCAL_ALPHA, FOCAL_GAMMA = 0.25, 2.0     # gamma = 2 -> plain square below
SEQ_W, GROUP_W, HATE_W = 1.0, 1.0, 2.0

LANES = 128
REL_COL = NUM_SEQ_LABELS     # relation score lives in lane 7 of the token rows
NEG = -1e30

# ---- packed parameter slab: (2H+8, 512) f32 ----
#   lanes   0:128 (block 0): rows 0:H  = [w_seq (7 cols) | w_rel token half (col 7)]
#                            rows H:2H = [0 ... w_rel mean half at col 7 ... 0]
#   lanes 128:256 (block 1): rows 0:H  = [w_grp (6) | w_hate (2) | 0...]
#   lanes 256:384 (block 2): rows 0:H  = [w_pool (H cols) | 0...]
#   row 2H                 : packed biases in the same lane layout
W_COLS = 4 * LANES          # 512
W_ROWS = 2 * H + 8          # 72
BIAS_ROW = 2 * H            # 64

# ---- packed labels: (32, 1) int32 ----
LAB_ROWS = 32
LAB_TOK0, LAB_GRP0, LAB_HATE0 = 0, 16, 24

# ---- single fused output slab: (32, 128) f32 ----
OUT_ROWS = 32
TOK_ROW0 = 0
GH_ROW0 = B * S             # 16
LOSS_ROW = 24


# ----------------------------- fused kernel -----------------------------
def fused_kernel(seq_ref, w_ref, lab_ref, out_ref):
    seq2d = seq_ref[...]                 # (B*S, H) f32
    W = w_ref[...]                       # (2H+8, 512) f32
    labs = lab_ref[...]                  # (32, 1) i32

    w_tok = W[0:2 * H, 0:LANES]                    # (2H, 128) token+relation rhs
    w_gh = W[0:H, LANES:2 * LANES]                 # (H, 128)  group/hate rhs
    w_pool = W[0:H, 2 * LANES:3 * LANES]           # (H, 128)  pooler rhs (tile-aligned)
    brow = W[BIAS_ROW:BIAS_ROW + 1, :]             # (1, 512)
    b_tok = brow[:, 0:LANES]
    b_gh = brow[:, LANES:2 * LANES]
    b_pool = brow[:, 2 * LANES:3 * LANES]

    # --- token classifier + relation head in ONE MXU pass (K = 2H) ---
    seq3 = seq2d.reshape(B, S, H)
    mean_seq = jnp.mean(seq3, axis=1)                                      # (B, H)
    mean_bc = jnp.broadcast_to(mean_seq[:, None, :], (B, S, H)).reshape(B * S, H)
    lhs_tok = jnp.concatenate([seq2d, mean_bc], axis=-1)                   # (B*S, 2H)
    tok = jnp.dot(lhs_tok, w_tok, preferred_element_type=jnp.float32) + b_tok  # (B*S,128)

    # --- CLS rows derived in-kernel (no separate input), BERT-style pooler ---
    cls = seq3[:, 0, :]                                                    # (B, H)
    pooled = jnp.tanh(jnp.dot(cls, w_pool, preferred_element_type=jnp.float32)
                      + b_pool)                                            # (B, 128); lanes >= H are tanh(0)=0
    gh = jnp.dot(pooled[:, 0:H], w_gh, preferred_element_type=jnp.float32) + b_gh  # (B,128)

    # --- losses, computed while logits are still live in VMEM/vregs ---
    lab_tok = labs[LAB_TOK0:LAB_TOK0 + B * S]      # (B*S, 1)
    lab_grp = labs[LAB_GRP0:LAB_GRP0 + B]          # (B, 1)
    lab_hate = labs[LAB_HATE0:LAB_HATE0 + B]       # (B, 1)

    def masked_ce(logits, labels_col, lo, hi):
        # logits: (N, 128) with valid classes in lanes [lo, hi); labels in [0, hi-lo)
        n = logits.shape[0]
        lane = jax.lax.broadcasted_iota(jnp.int32, (n, LANES), 1)
        valid_lane = jnp.logical_and(lane >= lo, lane < hi)
        x = jnp.where(valid_lane, logits, NEG)
        m = jnp.max(x, axis=-1, keepdims=True)
        e = jnp.where(valid_lane, jnp.exp(logits - m), 0.0)   # mask on the exp
        lse = m + jnp.log(jnp.sum(e, axis=-1, keepdims=True))
        onehot = (lane == (labels_col + lo)).astype(jnp.float32)  # ignore_index -> all-zero row
        return -jnp.sum(onehot * (logits - lse), axis=-1, keepdims=True)   # (N, 1)

    # token-level CrossEntropyLoss(ignore_index=-100), mean over valid tokens
    ce_tok = masked_ce(tok, lab_tok, 0, NUM_SEQ_LABELS)
    valid = (lab_tok != IGNORE_INDEX).astype(jnp.float32)
    seq_loss = (jnp.sum(ce_tok * valid, axis=0, keepdims=True)
                / jnp.sum(valid, axis=0, keepdims=True))                   # (1, 1)

    # FocalLoss(alpha=0.25, gamma=2.0, reduction='mean')
    def focal(labels_col, lo, hi):
        ce = masked_ce(gh, labels_col, lo, hi)
        pt = jnp.exp(-ce)
        omp = 1.0 - pt
        f = FOCAL_ALPHA * omp * omp * ce                                   # gamma == 2
        return jnp.sum(f, axis=0, keepdims=True) / f.shape[0]              # (1, 1)

    grp_loss = focal(lab_grp, 0, NUM_GROUP_LABELS)
    hate_loss = focal(lab_hate, NUM_GROUP_LABELS, NUM_GROUP_LABELS + NUM_HATE_LABELS)
    total = SEQ_W * seq_loss + GROUP_W * grp_loss + HATE_W * hate_loss

    lane1 = jax.lax.broadcasted_iota(jnp.int32, (1, LANES), 1)
    loss_row = (seq_loss * (lane1 == 0).astype(jnp.float32)
                + grp_loss * (lane1 == 1).astype(jnp.float32)
                + hate_loss * (lane1 == 2).astype(jnp.float32)
                + total * (lane1 == 3).astype(jnp.float32))

    # --- single lane-dense output slab ---
    out_ref[...] = jnp.zeros_like(out_ref)
    out_ref[TOK_ROW0:TOK_ROW0 + B * S, :] = tok
    out_ref[GH_ROW0:GH_ROW0 + B, :] = gh
    out_ref[LOSS_ROW:LOSS_ROW + 1, :] = loss_row


# ----------------------------- wrappers -----------------------------
def _vmem():
    return pl.BlockSpec(memory_space=pltpu.MemorySpace.VMEM)


def pack_params(p):
    """Pack all head weights + biases into one slab. Call ONCE per parameter set
    (hoisted out of the per-forward hot path)."""
    w = jnp.zeros((W_ROWS, W_COLS), jnp.float32)
    # block 0: token classifier + relation head
    w = w.at[0:H, 0:NUM_SEQ_LABELS].set(p["w_seq"])
    w = w.at[0:H, REL_COL].set(p["w_rel"][0])                    # relation token half
    w = w.at[H:2 * H, REL_COL].set(p["w_rel"][1])                # relation mean half
    # block 1: group + hate classifiers
    w = w.at[0:H, LANES:LANES + NUM_GROUP_LABELS].set(p["w_grp"])
    w = w.at[0:H, LANES + NUM_GROUP_LABELS:
             LANES + NUM_GROUP_LABELS + NUM_HATE_LABELS].set(p["w_hate"])
    # block 2: BERT-style pooler
    w = w.at[0:H, 2 * LANES:2 * LANES + H].set(p["w_pool"])
    # bias row
    w = w.at[BIAS_ROW, 0:NUM_SEQ_LABELS].set(p["b_seq"][0])
    w = w.at[BIAS_ROW, REL_COL].set(p["b_rel"][0, 0])
    w = w.at[BIAS_ROW, LANES:LANES + NUM_GROUP_LABELS].set(p["b_grp"][0])
    w = w.at[BIAS_ROW, LANES + NUM_GROUP_LABELS:
             LANES + NUM_GROUP_LABELS + NUM_HATE_LABELS].set(p["b_hate"][0])
    w = w.at[BIAS_ROW, 2 * LANES:2 * LANES + H].set(p["b_pool"][0])
    return w


def pack_labels(labels, group_labels, hate_labels):
    pad6 = jnp.zeros((6,), jnp.int32)
    flat = jnp.concatenate([
        labels.reshape(-1).astype(jnp.int32),      # rows  0:16
        group_labels.astype(jnp.int32), pad6,      # rows 16:24
        hate_labels.astype(jnp.int32), pad6,       # rows 24:32
    ])
    return flat[:, None]                           # (32, 1)


@jax.jit
def run_model(sequence_output, w_slab, labels, group_labels, hate_labels):
    seq2d = sequence_output.reshape(B * S, H)      # free at XLA level
    labs = pack_labels(labels, group_labels, hate_labels)

    slab = pl.pallas_call(
        fused_kernel,
        out_shape=jax.ShapeDtypeStruct((OUT_ROWS, LANES), jnp.float32),
        in_specs=[_vmem(), _vmem(), _vmem()],
        out_specs=_vmem(),
    )(seq2d, w_slab, labs)

    tok = slab[TOK_ROW0:TOK_ROW0 + B * S]
    gh = slab[GH_ROW0:GH_ROW0 + B]
    losses = slab[LOSS_ROW]
    return dict(
        sequence_logits=tok[:, :NUM_SEQ_LABELS].reshape(B, S, NUM_SEQ_LABELS),
        relation_scores=tok[:, REL_COL].reshape(B, S),
        group_logits=gh[:, :NUM_GROUP_LABELS],
        hate_logits=gh[:, NUM_GROUP_LABELS:NUM_GROUP_LABELS + NUM_HATE_LABELS],
        seq_loss=losses[0],
        group_loss=losses[1],
        hate_loss=losses[2],
        loss=losses[3],
    )


# ----------------------------- params / reference -----------------------------
def init_params(key):
    ks = jax.random.split(key, 10)

    def lin(kw, kb, fan_in, shape_w, shape_b):
        bound = 1.0 / np.sqrt(fan_in)
        w = jax.random.uniform(kw, shape_w, jnp.float32, -bound, bound)
        b = jax.random.uniform(kb, shape_b, jnp.float32, -bound, bound)
        return w, b

    w_pool, b_pool = lin(ks[0], ks[1], H, (H, H), (1, H))
    w_seq, b_seq = lin(ks[2], ks[3], H, (H, NUM_SEQ_LABELS), (1, NUM_SEQ_LABELS))
    w_grp, b_grp = lin(ks[4], ks[5], H, (H, NUM_GROUP_LABELS), (1, NUM_GROUP_LABELS))
    w_hate, b_hate = lin(ks[6], ks[7], H, (H, NUM_HATE_LABELS), (1, NUM_HATE_LABELS))
    # relation Linear(2H -> 1): stored as (2, H): row0 = token half, row1 = mean half
    w_rel, b_rel = lin(ks[8], ks[9], 2 * H, (2, H), (1, 1))
    return dict(w_pool=w_pool, b_pool=b_pool, w_seq=w_seq, b_seq=b_seq,
                w_grp=w_grp, b_grp=b_grp, w_hate=w_hate, b_hate=b_hate,
                w_rel=w_rel, b_rel=b_rel)


def reference_forward(seq_out, p, labels, glabels, hlabels):
    cls = seq_out[:, 0, :]
    pooled = jnp.tanh(cls @ p["w_pool"] + p["b_pool"])
    seq_logits = seq_out @ p["w_seq"] + p["b_seq"]
    grp_logits = pooled @ p["w_grp"] + p["b_grp"]
    hate_logits = pooled @ p["w_hate"] + p["b_hate"]
    mean_seq = jnp.mean(seq_out, axis=1, keepdims=True)
    mean_exp = jnp.broadcast_to(mean_seq, seq_out.shape)
    rel_in = jnp.concatenate([seq_out, mean_exp], axis=-1)            # (B, S, 2H)
    w_full = jnp.concatenate([p["w_rel"][0], p["w_rel"][1]], axis=0)  # (2H,)
    rel = rel_in @ w_full + p["b_rel"][0, 0]                          # (B, S)

    def lsm(x):
        return x - jax.scipy.special.logsumexp(x, axis=-1, keepdims=True)

    lp = lsm(seq_logits.reshape(-1, NUM_SEQ_LABELS))
    lab = labels.reshape(-1)
    valid = lab != IGNORE_INDEX
    safe = jnp.where(valid, lab, 0)
    ce = -jnp.take_along_axis(lp, safe[:, None], axis=-1)[:, 0]
    seq_loss = jnp.sum(jnp.where(valid, ce, 0.0)) / jnp.sum(valid.astype(jnp.float32))

    def focal(logits, y):
        lpx = lsm(logits)
        ce = -jnp.take_along_axis(lpx, y[:, None], axis=-1)[:, 0]
        pt = jnp.exp(-ce)
        return jnp.mean(FOCAL_ALPHA * (1.0 - pt) ** 2 * ce)

    g = focal(grp_logits, glabels)
    h = focal(hate_logits, hlabels)
    total = SEQ_W * seq_loss + GROUP_W * g + HATE_W * h
    return seq_logits, grp_logits, hate_logits, rel, seq_loss, g, h, total


# ----------------------------- main -----------------------------
if __name__ == "__main__":
    key = jax.random.PRNGKey(0)
    k_emb, k_ids, k_lab, k_grp, k_hate, k_par = jax.random.split(key, 6)

    params = init_params(k_par)
    w_slab = pack_params(params)        # hoisted: packed once per parameter set

    input_ids = jax.random.randint(k_ids, (B, S), 0, VOCAB, dtype=jnp.int32)
    attention_mask = jnp.ones((B, S), dtype=jnp.int32)  # unused beyond the (absent) encoder

    # synthetic stand-in for BERT last_hidden_state (deterministic embedding lookup)
    emb_table = 0.5 * jax.random.normal(k_emb, (VOCAB, H), dtype=jnp.float32)
    sequence_output = jnp.take(emb_table, input_ids, axis=0)          # (B, S, H)
    # dropout is identity in eval mode

    labels = jax.random.randint(k_lab, (B, S), 0, NUM_SEQ_LABELS, dtype=jnp.int32)
    labels = labels.at[:, 0].set(IGNORE_INDEX)                         # exercise ignore_index
    group_labels = jax.random.randint(k_grp, (B,), 0, NUM_GROUP_LABELS, dtype=jnp.int32)
    hate_labels = jax.random.randint(k_hate, (B,), 0, NUM_HATE_LABELS, dtype=jnp.int32)

    # ---- fused Pallas kernel ----
    out = run_model(sequence_output, w_slab, labels, group_labels, hate_labels)
    jax.block_until_ready(out)

    # ---- reference check (pure JAX) ----
    ref = reference_forward(sequence_output, params, labels, group_labels, hate_labels)
    got = (out["sequence_logits"], out["group_logits"], out["hate_logits"],
           out["relation_scores"], out["seq_loss"], out["group_loss"],
           out["hate_loss"], out["loss"])
    for g_val, r_val in zip(got, ref):
        np.testing.assert_allclose(np.asarray(g_val), np.asarray(r_val),
                                   rtol=1e-2, atol=1e-2)

    print("KERNEL_OK")
</pallas_src>

<mosaic_0001>
module attributes {stable_mosaic.version = 11 : i64} {
  func.func @fused_kernel(%arg0: memref<16x32xf32, #tpu.memory_space<vmem>>, %arg1: memref<72x512xf32, #tpu.memory_space<vmem>>, %arg2: memref<32x1xi32, #tpu.memory_space<vmem>>, %arg3: memref<32x128xf32, #tpu.memory_space<vmem>>) attributes {dimension_semantics = [], scalar_prefetch = 0 : i64, scratch_operands = 0 : i64, tpu.core_type = #tpu.core_type<tc>} {
    %c0 = arith.constant 0 : index
    %c0_0 = arith.constant 0 : index
    %0 = vector.load %arg0[%c0, %c0_0] : memref<16x32xf32, #tpu.memory_space<vmem>>, vector<16x32xf32>
    %c0_1 = arith.constant 0 : index
    %c0_2 = arith.constant 0 : index
    %1 = vector.load %arg1[%c0_1, %c0_2] : memref<72x512xf32, #tpu.memory_space<vmem>>, vector<72x512xf32>
    %c0_3 = arith.constant 0 : index
    %c0_4 = arith.constant 0 : index
    %2 = vector.load %arg2[%c0_3, %c0_4] : memref<32x1xi32, #tpu.memory_space<vmem>>, vector<32x1xi32>
    %3 = vector.extract_strided_slice %1 {offsets = [0, 0], sizes = [64, 128], strides = [1, 1]} : vector<72x512xf32> to vector<64x128xf32>
    %4 = vector.extract_strided_slice %1 {offsets = [0, 128], sizes = [32, 128], strides = [1, 1]} : vector<72x512xf32> to vector<32x128xf32>
    %5 = vector.extract_strided_slice %1 {offsets = [0, 256], sizes = [32, 128], strides = [1, 1]} : vector<72x512xf32> to vector<32x128xf32>
    %6 = vector.extract_strided_slice %1 {offsets = [64, 0], sizes = [1, 512], strides = [1, 1]} : vector<72x512xf32> to vector<1x512xf32>
    %7 = vector.extract_strided_slice %6 {offsets = [0, 0], sizes = [1, 128], strides = [1, 1]} : vector<1x512xf32> to vector<1x128xf32>
    %8 = vector.extract_strided_slice %6 {offsets = [0, 128], sizes = [1, 128], strides = [1, 1]} : vector<1x512xf32> to vector<1x128xf32>
    %9 = vector.extract_strided_slice %6 {offsets = [0, 256], sizes = [1, 128], strides = [1, 1]} : vector<1x512xf32> to vector<1x128xf32>
    %10 = vector.shape_cast %0 : vector<16x32xf32> to vector<2x8x32xf32>
    %cst = arith.constant dense<0.000000e+00> : vector<2x32xf32>
    %11 = vector.multi_reduction <add>, %10, %cst [1] : vector<2x8x32xf32> to vector<2x32xf32>
    %cst_5 = arith.constant 8.000000e+00 : f32
    %12 = vector.broadcast %cst_5 : f32 to vector<2x32xf32>
    %13 = arith.divf %11, %12 : vector<2x32xf32>
    %14 = vector.shape_cast %13 : vector<2x32xf32> to vector<2x1x32xf32>
    %15 = vector.shape_cast %14 : vector<2x1x32xf32> to vector<2x1x32xf32>
    %16 = vector.broadcast %15 : vector<2x1x32xf32> to vector<2x8x32xf32>
    %17 = vector.shape_cast %16 : vector<2x8x32xf32> to vector<16x32xf32>
    %18 = tpu.concatenate %0, %17 in 1 : vector<16x32xf32>, vector<16x32xf32> -> vector<16x64xf32>
    %cst_6 = arith.constant dense<0.000000e+00> : vector<16x128xf32>
    %19 = tpu.matmul %18, %3, %cst_6 {dimension_numbers = #tpu.dot_dimension_numbers<[1], [0], [0], [1], [0, 0, 1, 1], [], []>} : vector<16x64xf32>, vector<64x128xf32>, vector<16x128xf32> -> vector<16x128xf32>
    %20 = vector.broadcast %7 : vector<1x128xf32> to vector<16x128xf32>
    %21 = arith.addf %19, %20 : vector<16x128xf32>
    %22 = vector.extract_strided_slice %10 {offsets = [0, 0, 0], sizes = [2, 1, 32], strides = [1, 1, 1]} : vector<2x8x32xf32> to vector<2x1x32xf32>
    %23 = vector.shape_cast %22 : vector<2x1x32xf32> to vector<2x32xf32>
    %cst_7 = arith.constant dense<0.000000e+00> : vector<2x128xf32>
    %24 = tpu.matmul %23, %5, %cst_7 {dimension_numbers = #tpu.dot_dimension_numbers<[1], [0], [0], [1], [0, 0, 1, 1], [], []>} : vector<2x32xf32>, vector<32x128xf32>, vector<2x128xf32> -> vector<2x128xf32>
    %25 = vector.broadcast %9 : vector<1x128xf32> to vector<2x128xf32>
    %26 = arith.addf %24, %25 : vector<2x128xf32>
    %27 = math.tanh %26 : vector<2x128xf32>
    %28 = vector.extract_strided_slice %27 {offsets = [0, 0], sizes = [2, 32], strides = [1, 1]} : vector<2x128xf32> to vector<2x32xf32>
    %cst_8 = arith.constant dense<0.000000e+00> : vector<2x128xf32>
    %29 = tpu.matmul %28, %4, %cst_8 {dimension_numbers = #tpu.dot_dimension_numbers<[1], [0], [0], [1], [0, 0, 1, 1], [], []>} : vector<2x32xf32>, vector<32x128xf32>, vector<2x128xf32> -> vector<2x128xf32>
    %30 = vector.broadcast %8 : vector<1x128xf32> to vector<2x128xf32>
    %31 = arith.addf %29, %30 : vector<2x128xf32>
    %32 = vector.extract_strided_slice %2 {offsets = [0, 0], sizes = [16, 1], strides = [1, 1]} : vector<32x1xi32> to vector<16x1xi32>
    %33 = vector.extract_strided_slice %2 {offsets = [16, 0], sizes = [2, 1], strides = [1, 1]} : vector<32x1xi32> to vector<2x1xi32>
    %34 = vector.extract_strided_slice %2 {offsets = [24, 0], sizes = [2, 1], strides = [1, 1]} : vector<32x1xi32> to vector<2x1xi32>
    %35 = tpu.iota {dimensions = array<i32: 1>} : vector<16x128xi32>
    %c0_i32 = arith.constant 0 : i32
    %36 = vector.broadcast %c0_i32 : i32 to vector<16x128xi32>
    %37 = arith.cmpi sge, %35, %36 : vector<16x128xi32>
    %c7_i32 = arith.constant 7 : i32
    %38 = vector.broadcast %c7_i32 : i32 to vector<16x128xi32>
    %39 = arith.cmpi slt, %35, %38 : vector<16x128xi32>
    %40 = arith.andi %37, %39 : vector<16x128xi1>
    %cst_9 = arith.constant -1.000000e+30 : f32
    %41 = vector.broadcast %cst_9 : f32 to vector<16x128xf32>
    %42 = arith.select %40, %21, %41 : vector<16x128xi1>, vector<16x128xf32>
    %cst_10 = arith.constant dense<0xFF800000> : vector<16xf32>
    %43 = vector.multi_reduction <maximumf>, %42, %cst_10 [1] : vector<16x128xf32> to vector<16xf32>
    %44 = vector.shape_cast %43 : vector<16xf32> to vector<16x1xf32>
    %45 = vector.broadcast %44 : vector<16x1xf32> to vector<16x128xf32>
    %46 = arith.subf %21, %45 : vector<16x128xf32>
    %47 = math.exp %46 : vector<16x128xf32>
    %cst_11 = arith.constant 0.000000e+00 : f32
    %48 = vector.broadcast %cst_11 : f32 to vector<16x128xf32>
    %49 = arith.select %40, %47, %48 : vector<16x128xi1>, vector<16x128xf32>
    %cst_12 = arith.constant dense<0.000000e+00> : vector<16xf32>
    %50 = vector.multi_reduction <add>, %49, %cst_12 [1] : vector<16x128xf32> to vector<16xf32>
    %51 = vector.shape_cast %50 : vector<16xf32> to vector<16x1xf32>
    %52 = math.log %51 : vector<16x1xf32>
    %53 = arith.addf %44, %52 : vector<16x1xf32>
    %c0_i32_13 = arith.constant 0 : i32
    %54 = vector.broadcast %c0_i32_13 : i32 to vector<16x1xi32>
    %55 = arith.addi %32, %54 : vector<16x1xi32>
    %56 = vector.broadcast %55 : vector<16x1xi32> to vector<16x128xi32>
    %57 = arith.cmpi eq, %35, %56 : vector<16x128xi32>
    %58 = arith.extui %57 : vector<16x128xi1> to vector<16x128xi32>
    %59 = arith.sitofp %58 : vector<16x128xi32> to vector<16x128xf32>
    %60 = vector.broadcast %53 : vector<16x1xf32> to vector<16x128xf32>
    %61 = arith.subf %21, %60 : vector<16x128xf32>
    %62 = arith.mulf %59, %61 : vector<16x128xf32>
    %cst_14 = arith.constant dense<0.000000e+00> : vector<16xf32>
    %63 = vector.multi_reduction <add>, %62, %cst_14 [1] : vector<16x128xf32> to vector<16xf32>
    %64 = vector.shape_cast %63 : vector<16xf32> to vector<16x1xf32>
    %cst_15 = arith.constant 0.000000e+00 : f32
    %65 = vector.broadcast %cst_15 : f32 to vector<16x1xf32>
    %66 = arith.subf %65, %64 : vector<16x1xf32>
    %c-100_i32 = arith.constant -100 : i32
    %67 = vector.broadcast %c-100_i32 : i32 to vector<16x1xi32>
    %68 = arith.cmpi ne, %32, %67 : vector<16x1xi32>
    %69 = arith.extui %68 : vector<16x1xi1> to vector<16x1xi32>
    %70 = arith.sitofp %69 : vector<16x1xi32> to vector<16x1xf32>
    %71 = arith.mulf %66, %70 : vector<16x1xf32>
    %cst_16 = arith.constant dense<0.000000e+00> : vector<1xf32>
    %72 = vector.multi_reduction <add>, %71, %cst_16 [0] : vector<16x1xf32> to vector<1xf32>
    %73 = vector.shape_cast %72 : vector<1xf32> to vector<1x1xf32>
    %cst_17 = arith.constant dense<0.000000e+00> : vector<1xf32>
    %74 = vector.multi_reduction <add>, %70, %cst_17 [0] : vector<16x1xf32> to vector<1xf32>
    %75 = vector.shape_cast %74 : vector<1xf32> to vector<1x1xf32>
    %76 = arith.divf %73, %75 : vector<1x1xf32>
    %77 = tpu.iota {dimensions = array<i32: 1>} : vector<2x128xi32>
    %c0_i32_18 = arith.constant 0 : i32
    %78 = vector.broadcast %c0_i32_18 : i32 to vector<2x128xi32>
    %79 = arith.cmpi sge, %77, %78 : vector<2x128xi32>
    %c6_i32 = arith.constant 6 : i32
    %80 = vector.broadcast %c6_i32 : i32 to vector<2x128xi32>
    %81 = arith.cmpi slt, %77, %80 : vector<2x128xi32>
    %82 = arith.andi %79, %81 : vector<2x128xi1>
    %cst_19 = arith.constant -1.000000e+30 : f32
    %83 = vector.broadcast %cst_19 : f32 to vector<2x128xf32>
    %84 = arith.select %82, %31, %83 : vector<2x128xi1>, vector<2x128xf32>
    %cst_20 = arith.constant dense<0xFF800000> : vector<2xf32>
    %85 = vector.multi_reduction <maximumf>, %84, %cst_20 [1] : vector<2x128xf32> to vector<2xf32>
    %86 = vector.shape_cast %85 : vector<2xf32> to vector<2x1xf32>
    %87 = vector.broadcast %86 : vector<2x1xf32> to vector<2x128xf32>
    %88 = arith.subf %31, %87 : vector<2x128xf32>
    %89 = math.exp %88 : vector<2x128xf32>
    %cst_21 = arith.constant 0.000000e+00 : f32
    %90 = vector.broadcast %cst_21 : f32 to vector<2x128xf32>
    %91 = arith.select %82, %89, %90 : vector<2x128xi1>, vector<2x128xf32>
    %cst_22 = arith.constant dense<0.000000e+00> : vector<2xf32>
    %92 = vector.multi_reduction <add>, %91, %cst_22 [1] : vector<2x128xf32> to vector<2xf32>
    %93 = vector.shape_cast %92 : vector<2xf32> to vector<2x1xf32>
    %94 = math.log %93 : vector<2x1xf32>
    %95 = arith.addf %86, %94 : vector<2x1xf32>
    %c0_i32_23 = arith.constant 0 : i32
    %96 = vector.broadcast %c0_i32_23 : i32 to vector<2x1xi32>
    %97 = arith.addi %33, %96 : vector<2x1xi32>
    %98 = vector.broadcast %97 : vector<2x1xi32> to vector<2x128xi32>
    %99 = arith.cmpi eq, %77, %98 : vector<2x128xi32>
    %100 = arith.extui %99 : vector<2x128xi1> to vector<2x128xi32>
    %101 = arith.sitofp %100 : vector<2x128xi32> to vector<2x128xf32>
    %102 = vector.broadcast %95 : vector<2x1xf32> to vector<2x128xf32>
    %103 = arith.subf %31, %102 : vector<2x128xf32>
    %104 = arith.mulf %101, %103 : vector<2x128xf32>
    %cst_24 = arith.constant dense<0.000000e+00> : vector<2xf32>
    %105 = vector.multi_reduction <add>, %104, %cst_24 [1] : vector<2x128xf32> to vector<2xf32>
    %106 = vector.shape_cast %105 : vector<2xf32> to vector<2x1xf32>
    %cst_25 = arith.constant 0.000000e+00 : f32
    %107 = vector.broadcast %cst_25 : f32 to vector<2x1xf32>
    %108 = arith.subf %107, %106 : vector<2x1xf32>
    %cst_26 = arith.constant 0.000000e+00 : f32
    %109 = vector.broadcast %cst_26 : f32 to vector<2x1xf32>
    %110 = arith.subf %109, %108 : vector<2x1xf32>
    %111 = math.exp %110 : vector<2x1xf32>
    %cst_27 = arith.constant 1.000000e+00 : f32
    %112 = vector.broadcast %cst_27 : f32 to vector<2x1xf32>
    %113 = arith.subf %112, %111 : vector<2x1xf32>
    %cst_28 = arith.constant 2.500000e-01 : f32
    %114 = vector.broadcast %cst_28 : f32 to vector<2x1xf32>
    %115 = arith.mulf %114, %113 : vector<2x1xf32>
    %116 = arith.mulf %115, %113 : vector<2x1xf32>
    %117 = arith.mulf %116, %108 : vector<2x1xf32>
    %cst_29 = arith.constant dense<0.000000e+00> : vector<1xf32>
    %118 = vector.multi_reduction <add>, %117, %cst_29 [0] : vector<2x1xf32> to vector<1xf32>
    %119 = vector.shape_cast %118 : vector<1xf32> to vector<1x1xf32>
    %cst_30 = arith.constant 2.000000e+00 : f32
    %120 = vector.broadcast %cst_30 : f32 to vector<1x1xf32>
    %121 = arith.divf %119, %120 : vector<1x1xf32>
    %122 = tpu.iota {dimensions = array<i32: 1>} : vector<2x128xi32>
    %c6_i32_31 = arith.constant 6 : i32
    %123 = vector.broadcast %c6_i32_31 : i32 to vector<2x128xi32>
    %124 = arith.cmpi sge, %122, %123 : vector<2x128xi32>
    %c8_i32 = arith.constant 8 : i32
    %125 = vector.broadcast %c8_i32 : i32 to vector<2x128xi32>
    %126 = arith.cmpi slt, %122, %125 : vector<2x128xi32>
    %127 = arith.andi %124, %126 : vector<2x128xi1>
    %cst_32 = arith.constant -1.000000e+30 : f32
    %128 = vector.broadcast %cst_32 : f32 to vector<2x128xf32>
    %129 = arith.select %127, %31, %128 : vector<2x128xi1>, vector<2x128xf32>
    %cst_33 = arith.constant dense<0xFF800000> : vector<2xf32>
    %130 = vector.multi_reduction <maximumf>, %129, %cst_33 [1] : vector<2x128xf32> to vector<2xf32>
    %131 = vector.shape_cast %130 : vector<2xf32> to vector<2x1xf32>
    %132 = vector.broadcast %131 : vector<2x1xf32> to vector<2x128xf32>
    %133 = arith.subf %31, %132 : vector<2x128xf32>
    %134 = math.exp %133 : vector<2x128xf32>
    %cst_34 = arith.constant 0.000000e+00 : f32
    %135 = vector.broadcast %cst_34 : f32 to vector<2x128xf32>
    %136 = arith.select %127, %134, %135 : vector<2x128xi1>, vector<2x128xf32>
    %cst_35 = arith.constant dense<0.000000e+00> : vector<2xf32>
    %137 = vector.multi_reduction <add>, %136, %cst_35 [1] : vector<2x128xf32> to vector<2xf32>
    %138 = vector.shape_cast %137 : vector<2xf32> to vector<2x1xf32>
    %139 = math.log %138 : vector<2x1xf32>
    %140 = arith.addf %131, %139 : vector<2x1xf32>
    %c6_i32_36 = arith.constant 6 : i32
    %141 = vector.broadcast %c6_i32_36 : i32 to vector<2x1xi32>
    %142 = arith.addi %34, %141 : vector<2x1xi32>
    %143 = vector.broadcast %142 : vector<2x1xi32> to vector<2x128xi32>
    %144 = arith.cmpi eq, %122, %143 : vector<2x128xi32>
    %145 = arith.extui %144 : vector<2x128xi1> to vector<2x128xi32>
    %146 = arith.sitofp %145 : vector<2x128xi32> to vector<2x128xf32>
    %147 = vector.broadcast %140 : vector<2x1xf32> to vector<2x128xf32>
    %148 = arith.subf %31, %147 : vector<2x128xf32>
    %149 = arith.mulf %146, %148 : vector<2x128xf32>
    %cst_37 = arith.constant dense<0.000000e+00> : vector<2xf32>
    %150 = vector.multi_reduction <add>, %149, %cst_37 [1] : vector<2x128xf32> to vector<2xf32>
    %151 = vector.shape_cast %150 : vector<2xf32> to vector<2x1xf32>
    %cst_38 = arith.constant 0.000000e+00 : f32
    %152 = vector.broadcast %cst_38 : f32 to vector<2x1xf32>
    %153 = arith.subf %152, %151 : vector<2x1xf32>
    %cst_39 = arith.constant 0.000000e+00 : f32
    %154 = vector.broadcast %cst_39 : f32 to vector<2x1xf32>
    %155 = arith.subf %154, %153 : vector<2x1xf32>
    %156 = math.exp %155 : vector<2x1xf32>
    %cst_40 = arith.constant 1.000000e+00 : f32
    %157 = vector.broadcast %cst_40 : f32 to vector<2x1xf32>
    %158 = arith.subf %157, %156 : vector<2x1xf32>
    %cst_41 = arith.constant 2.500000e-01 : f32
    %159 = vector.broadcast %cst_41 : f32 to vector<2x1xf32>
    %160 = arith.mulf %159, %158 : vector<2x1xf32>
    %161 = arith.mulf %160, %158 : vector<2x1xf32>
    %162 = arith.mulf %161, %153 : vector<2x1xf32>
    %cst_42 = arith.constant dense<0.000000e+00> : vector<1xf32>
    %163 = vector.multi_reduction <add>, %162, %cst_42 [0] : vector<2x1xf32> to vector<1xf32>
    %164 = vector.shape_cast %163 : vector<1xf32> to vector<1x1xf32>
    %cst_43 = arith.constant 2.000000e+00 : f32
    %165 = vector.broadcast %cst_43 : f32 to vector<1x1xf32>
    %166 = arith.divf %164, %165 : vector<1x1xf32>
    %cst_44 = arith.constant 1.000000e+00 : f32
    %167 = vector.broadcast %cst_44 : f32 to vector<1x1xf32>
    %168 = arith.mulf %167, %76 : vector<1x1xf32>
    %cst_45 = arith.constant 1.000000e+00 : f32
    %169 = vector.broadcast %cst_45 : f32 to vector<1x1xf32>
    %170 = arith.mulf %169, %121 : vector<1x1xf32>
    %171 = arith.addf %168, %170 : vector<1x1xf32>
    %cst_46 = arith.constant 2.000000e+00 : f32
    %172 = vector.broadcast %cst_46 : f32 to vector<1x1xf32>
    %173 = arith.mulf %172, %166 : vector<1x1xf32>
    %174 = arith.addf %171, %173 : vector<1x1xf32>
    %175 = tpu.iota {dimensions = array<i32: 1>} : vector<1x128xi32>
    %c0_i32_47 = arith.constant 0 : i32
    %176 = vector.broadcast %c0_i32_47 : i32 to vector<1x128xi32>
    %177 = arith.cmpi eq, %175, %176 : vector<1x128xi32>
    %178 = arith.extui %177 : vector<1x128xi1> to vector<1x128xi32>
    %179 = arith.sitofp %178 : vector<1x128xi32> to vector<1x128xf32>
    %180 = vector.broadcast %76 : vector<1x1xf32> to vector<1x128xf32>
    %181 = arith.mulf %180, %179 : vector<1x128xf32>
    %c1_i32 = arith.constant 1 : i32
    %182 = vector.broadcast %c1_i32 : i32 to vector<1x128xi32>
    %183 = arith.cmpi eq, %175, %182 : vector<1x128xi32>
    %184 = arith.extui %183 : vector<1x128xi1> to vector<1x128xi32>
    %185 = arith.sitofp %184 : vector<1x128xi32> to vector<1x128xf32>
    %186 = vector.broadcast %121 : vector<1x1xf32> to vector<1x128xf32>
    %187 = arith.mulf %186, %185 : vector<1x128xf32>
    %188 = arith.addf %181, %187 : vector<1x128xf32>
    %c2_i32 = arith.constant 2 : i32
    %189 = vector.broadcast %c2_i32 : i32 to vector<1x128xi32>
    %190 = arith.cmpi eq, %175, %189 : vector<1x128xi32>
    %191 = arith.extui %190 : vector<1x128xi1> to vector<1x128xi32>
    %192 = arith.sitofp %191 : vector<1x128xi32> to vector<1x128xf32>
    %193 = vector.broadcast %166 : vector<1x1xf32> to vector<1x128xf32>
    %194 = arith.mulf %193, %192 : vector<1x128xf32>
    %195 = arith.addf %188, %194 : vector<1x128xf32>
    %c3_i32 = arith.constant 3 : i32
    %196 = vector.broadcast %c3_i32 : i32 to vector<1x128xi32>
    %197 = arith.cmpi eq, %175, %196 : vector<1x128xi32>
    %198 = arith.extui %197 : vector<1x128xi1> to vector<1x128xi32>
    %199 = arith.sitofp %198 : vector<1x128xi32> to vector<1x128xf32>
    %200 = vector.broadcast %174 : vector<1x1xf32> to vector<1x128xf32>
    %201 = arith.mulf %200, %199 : vector<1x128xf32>
    %202 = arith.addf %195, %201 : vector<1x128xf32>
    %cst_48 = arith.constant 0.000000e+00 : f32
    %203 = vector.broadcast %cst_48 : f32 to vector<32x128xf32>
    %c0_49 = arith.constant 0 : index
    %c0_50 = arith.constant 0 : index
    %204 = vector.load %arg3[%c0_49, %c0_50] : memref<32x128xf32, #tpu.memory_space<vmem>>, vector<32x128xf32>
    tpu.vector_store %arg3[%c0_49, %c0_50], %203 {strides = array<i32>} : memref<32x128xf32, #tpu.memory_space<vmem>>, vector<32x128xf32>,
    %c0_51 = arith.constant 0 : index
    %c0_52 = arith.constant 0 : index
    %205 = vector.load %arg3[%c0_51, %c0_52] : memref<32x128xf32, #tpu.memory_space<vmem>>, vector<16x128xf32>
    tpu.vector_store %arg3[%c0_51, %c0_52], %21 {strides = array<i32>} : memref<32x128xf32, #tpu.memory_space<vmem>>, vector<16x128xf32>,
    %c16 = arith.constant 16 : index
    %c0_53 = arith.constant 0 : index
    %206 = vector.load %arg3[%c16, %c0_53] : memref<32x128xf32, #tpu.memory_space<vmem>>, vector<2x128xf32>
    tpu.vector_store %arg3[%c16, %c0_53], %31 {strides = array<i32>} : memref<32x128xf32, #tpu.memory_space<vmem>>, vector<2x128xf32>,
    %c24 = arith.constant 24 : index
    %c0_54 = arith.constant 0 : index
    %207 = vector.load %arg3[%c24, %c0_54] : memref<32x128xf32, #tpu.memory_space<vmem>>, vector<1x128xf32>
    tpu.vector_store %arg3[%c24, %c0_54], %202 {strides = array<i32>} : memref<32x128xf32, #tpu.memory_space<vmem>>, vector<1x128xf32>,
    return
  }
}

</mosaic_0001>

<llo_original>
// kernel: squeeze.7
$region0: #{squeeze.7}
  %s0 = inlined_call_operand.vmem [shape: f32[16], index: 0, kind: input, shape index: {}]
  %s1 = inlined_call_operand.hbm [shape: f32[2,8], index: 1, kind: output, shape index: {}]
  $region1: #{squeeze.7} parent=0
    #allocation0 [shape = 'u8[1024]{0}', space=vmem, size = 0x400, scoped, tag = 'operand span for operand 1']
    #allocation1 [shape = 's32[1]{0}', space=sflag, size = 0x4, scoped, tag = 'scoped memory for squeeze.7']
    #allocation2 [shape = 'u8[4096]{0}', space=vmem, size = 0x1000, scoped, tag = 'scoped mem for output reshape']
    #allocation3 [shape = 'u8[4096]{0}', space=vmem, size = 0x1000, scoped, tag = 'scoped mem for input reshape']
    %2 = vsyncpa [#allocation1], 0
    %s4 = sshllo.u32 0, 1
    %v5 = vld [vmem:[%s0] sm:%s4]
    %6 = vst [vmem:[#allocation3] sm:%s4] %v5
    %v7 = vld [vmem:[#allocation3] sm:$0x1]
    %vm8 = vcmask 64512
    %9 = vst.msk [vmem:[#allocation2] sm:$0x1] %vm8, %v7
    %v10 = vld [vmem:[#allocation3] sm:$0x1]
    %11 = vrot.lane.b32.xlu0 %v10, 120
    %v12 = vpop.permute.xlu0 %11
    %vm13 = vcmask 64512
    %s14 = scalar_lea.vmem [#allocation2], 1
    %15 = vst.msk [vmem:[%s14] sm:$0x1] %vm13, %v12
    %s17 = sshllo.u32 0, 2
    %v19 = vld [vmem:[#allocation2] sm:%s17]
    %s20 = sshllo.u32 0, 2
    %21 = vst [vmem:[#allocation0] sm:%s20] %v19
    %s23 = ssub.s32 32, 32
    %24 = vsyncadd [#allocation1], %s23
    %s26 = sshll.u32 [#allocation0], 4
    %s27 = int_to_ptr.vmem [resolvable:$true] %s26
    %29 = dma.vmem_to_hbm [thread:$0]  %s27, 32, %s1, [#allocation1]
    %30 = dma.done [#allocation1], 32
    %31 = vsyncpa [#allocation1], 1

// kernel: run_model.1
$region0: #{run_model.1}
  #allocation0 [shape = 'u32[]', space=smem, size = 0x4, offset = 0x4, fixed_abs, tag = 'smem constant byte address 0x4 - core index']
  #allocation1 [shape = 'u32[144,128]{1,0:T(1,128)}', space=vmem, size = 0x12000, scoped, tag = 'internal scratch']
  %s0 = inlined_call_operand.vmem [shape: f32[16,32], index: 0, kind: input, shape index: {}]
  %s1 = inlined_call_operand.hbm [shape: f32[72,512], index: 1, kind: input, shape index: {}]
  %s2 = inlined_call_operand.vmem [shape: s32[32,1], index: 2, kind: input, shape index: {}]
  %s3 = inlined_call_operand.vmem [shape: f32[32,128], index: 3, kind: output, shape index: {}]
  %s4 = sld [smem:[#allocation0]]
  $region26: #{run_model.1} parent=0
    _
  %s6 = ssub.s32 1, %s4
  %s7 = scalar_select 0, %s6, %s4
  $region1: #{run_model.1} parent=0
    #allocation2 [shape = 'u8[147456]{0}', space=vmem, size = 0x24000, scoped, tag = 'input window, operand 1, single buffered']
    #allocation3 [shape = 's32[1]{0}', space=sflag, size = 0x4, scoped, tag = 'scoped memory for run_model.1']
    %8 = vsyncpa [#allocation3], 0
    // Predicated region
    $region2: #{run_model.1} parent=1 // pred_check
      _
    $region3: #{run_model.1} parent=1 // pred_check_branch
      %10 = sbr.rel (0) target = $region5
    $region4: #{run_model.1} parent=1 // pred_region
      _
    $region5: #{run_model.1} parent=1 // pred_fallthru
      _
    // Predicated region
    $region6: #{run_model.1} parent=1 // pred_check
      _
    $region7: #{run_model.1} parent=1 // pred_check_branch
      %12 = sbr.rel (0) target = $region9
    $region8: #{run_model.1} parent=1 // pred_region
      %s14 = ssub.s32 4608, 4608
      %15 = vsyncadd [#allocation3], %s14
      %s16 = sshll.u32 [#allocation2], 4
      %s17 = int_to_ptr.vmem [resolvable:$true] %s16
      %22 = dma.hbm_to_vmem [thread:$0]  %s1, 4608, %s17, [#allocation3], 512, 512, 32
    $region9: #{run_model.1} parent=1 // pred_fallthru
      _
    // Predicated region
    $region10: #{run_model.1} parent=1 // pred_check
      _
    $region11: #{run_model.1} parent=1 // pred_check_branch
      %24 = sbr.rel (0) target = $region13
    $region12: #{run_model.1} parent=1 // pred_region
      _
    $region13: #{run_model.1} parent=1 // pred_fallthru
      _
    // Predicated region
    $region14: #{run_model.1} parent=1 // pred_check
      _
    $region15: #{run_model.1} parent=1 // pred_check_branch
      %26 = sbr.rel (0) target = $region17
    $region16: #{run_model.1} parent=1 // pred_region
      %27 = dma.done [#allocation3], 4608
    $region17: #{run_model.1} parent=1 // pred_fallthru
      _
    %v28 = vld [vmem:[%s0] sm:$0xff]
    %v29 = vld [vmem:[%s0 + $0x8] sm:$0xff]
    %v30 = vld [vmem:[#allocation2] sm:$0xff]
    %v31 = vld [vmem:[#allocation2 + $0x8] sm:$0xff]
    %v32 = vld [vmem:[#allocation2 + $0x10] sm:$0xff]
    %v33 = vld [vmem:[#allocation2 + $0x20] sm:$0xff]
    %v34 = vld [vmem:[#allocation2 + $0x28] sm:$0xff]
    %v35 = vld [vmem:[#allocation2 + $0x30] sm:$0xff]
    %v36 = vld [vmem:[#allocation2 + $0x40] sm:$0xff]
    %v37 = vld [vmem:[#allocation2 + $0x48] sm:$0xff]
    %v38 = vld [vmem:[#allocation2 + $0x50] sm:$0xff]
    %v39 = vld [vmem:[#allocation2 + $0x60] sm:$0xff]
    %v40 = vld [vmem:[#allocation2 + $0x68] sm:$0xff]
    %v41 = vld [vmem:[#allocation2 + $0x70] sm:$0xff]
    %v42 = vld [vmem:[#allocation2 + $0x80] sm:$0xff]
    %v43 = vld [vmem:[#allocation2 + $0xa0] sm:$0xff]
    %v44 = vld [vmem:[#allocation2 + $0xc0] sm:$0xff]
    %v45 = vld [vmem:[#allocation2 + $0xe0] sm:$0xff]
    %v46 = vld [vmem:[#allocation2 + $0x100] sm:$0xff]
    %v47 = vld [vmem:[#allocation2 + $0x108] sm:$0xff]
    %v48 = vld [vmem:[#allocation2 + $0x110] sm:$0xff]
    %v49 = vld [vmem:[%s2] sm:$0xff]
    %v50 = vld [vmem:[%s2 + $0x8] sm:$0xff]
    %v51 = vld [vmem:[%s2 + $0x10] sm:$0xff]
    %v52 = vld [vmem:[%s2 + $0x18] sm:$0xff]
    %vm53 = vcmask 261120
    %v54 = vsel %vm53, %v28, 0.0
    %v55 = vrot.slane %v54, 4
    %v56 = vadd.f32 %v54, %v55
    %v57 = vrot.slane %v56, 2
    %v58 = vadd.f32 %v56, %v57
    %v59 = vrot.slane %v58, 1
    %v60 = vadd.f32 %v58, %v59
    %v61 = vsel %vm53, %v29, 0.0
    %v62 = vrot.slane %v61, 4
    %v63 = vadd.f32 %v61, %v62
    %v64 = vrot.slane %v63, 2
    %v65 = vadd.f32 %v63, %v64
    %v66 = vrot.slane %v65, 1
    %v67 = vadd.f32 %v65, %v66
    %v68 = vrcp.pop 8.0
    %v69 = vmul.f32 %v60, %v68
    %v70 = vmul.f32 %v67, %v68
    %73 = vrot.lane.b32.xlu0 %v69, 32
    %v74 = vpop.permute.xlu0 %73
    %75 = vrot.lane.b32.xlu0 %v70, 32
    %v76 = vpop.permute.xlu0 %75
    %v79 = vsel %vm53, %v28, %v74
    %v80 = vsel %vm53, %v29, %v76
    %v81 = vlaneseq
    %v82 = vshrl.u32 %v81, 7
    %v83 = vsub.s32 0, %v82
    %v84 = vrot.slane %v46, %v83
    %vm85 = vcmask 523264
    %v87 = vsel %vm85, %v79, 0
    %v90 = vsel %vm85, %v80, 0
    %92 = vmatprep.subr.mxu0 0.0
    %93 = vmatpush1.msra.mxu0 %v30
    %94 = vmatprep.subr.mxu0 0.0
    %95 = vmatpush1.msra.mxu0 %v33
    %96 = vmatprep.subr.mxu0 0.0
    %97 = vmatpush1.msra.mxu0 %v36
    %98 = vmatprep.subr.mxu0 0.0
    %99 = vmatpush1.msra.mxu0 %v39
    %100 = vmatprep.subr.mxu0 0.0
    %101 = vmatpush1.msra.mxu0 %v42
    %102 = vmatprep.subr.mxu0 0.0
    %103 = vmatpush1.msra.mxu0 %v43
    %104 = vmatprep.subr.mxu0 0.0
    %105 = vmatpush1.msra.mxu0 %v44
    %106 = vmatprep.subr.mxu0 0.0
    %107 = vmatpush1.msra.mxu0 %v45
    %108 = vmatprep.subr.mxu0 0.0
    %109 = vmatpush1.msra.mxu0 0.0
    %110 = vmatprep.subr.mxu0 0.0
    %111 = vmatpush1.msra.mxu0 0.0
    %112 = vmatprep.subr.mxu0 0.0
    %113 = vmatpush1.msra.mxu0 0.0
    %114 = vmatprep.subr.mxu0 0.0
    %115 = vmatpush1.msra.mxu0 0.0
    %116 = vmatprep.subr.mxu0 0.0
    %117 = vmatpush1.msra.mxu0 0.0
    %118 = vmatprep.subr.mxu0 0.0
    %119 = vmatpush1.msra.mxu0 0.0
    %120 = vmatprep.subr.mxu0 0.0
    %121 = vmatpush1.msra.mxu0 0.0
    %122 = vmatprep.subr.mxu0 0.0
    %123 = vmatpush1.msra.mxu0 0.0
    %124 = vmatprep.subr.mxu0 0.0
    %125 = vmatpush1.msra.mxu0 0.0
    %126 = vmatprep.subr.mxu0 0.0
    %127 = vmatpush1.msra.mxu0 0.0
    %128 = vmatprep.subr.mxu0 0.0
    %129 = vmatpush1.msra.mxu0 0.0
    %130 = vmatprep.subr.mxu0 0.0
    %131 = vmatpush1.msra.mxu0 0.0
    %132 = vmatprep.subr.mxu0 0.0
    %133 = vmatpush1.msra.mxu0 0.0
    %134 = vmatprep.subr.mxu0 0.0
    %135 = vmatpush1.msra.mxu0 0.0
    %136 = vmatprep.subr.mxu0 0.0
    %137 = vmatpush1.msra.mxu0 0.0
    %138 = vmatprep.subr.mxu0 0.0
    %139 = vmatpush1.msra.mxu0 0.0
    %140 = vmatprep.subr.mxu0 0.0
    %141 = vmatpush1.msra.mxu0 0.0
    %142 = vmatprep.subr.mxu0 0.0
    %143 = vmatpush1.msra.mxu0 0.0
    %144 = vmatprep.subr.mxu0 0.0
    %145 = vmatpush1.msra.mxu0 0.0
    %146 = vmatprep.subr.mxu0 0.0
    %147 = vmatpush1.msra.mxu0 0.0
    %148 = vmatprep.subr.mxu0 0.0
    %149 = vmatpush1.msra.mxu0 0.0
    %150 = vmatprep.subr.mxu0 0.0
    %151 = vmatpush1.msra.mxu0 0.0
    %152 = vmatprep.subr.mxu0 0.0
    %153 = vmatpush1.msra.mxu0 0.0
    %154 = vmatprep.subr.mxu0 0.0
    %155 = vmatpush1.msra.mxu0 0.0
    %156 = vmatprep.mubr.f32.mxu0 0.0
    %157 = vmatmul.mubr.f32.gmra.mrb[0].mxu0 %v87
    %v158 = vpop.f32.mrb[0].mxu0
    %v159 = vadd.f32 %v84, %v158
    %v160 = vpop.f32.mrb[0].mxu0
    %161 = vmatprep.mubr.f32.mxu0 0.0
    %162 = vmatmul.mubr.f32.gmra.mrb[0].mxu0 %v90
    %v163 = vpop.f32.mrb[0].mxu0
    %v164 = vadd.f32 %v84, %v163
    %v165 = vpop.f32.mrb[0].mxu0
    %166 = vdwg.mxu0
    %v167 = vlaneseq
    %v168 = vshrl.u32 %v167, 7
    %v169 = vsub.s32 0, %v168
    %v170 = vrot.slane %v48, %v169
    %v173 = vrot.slane %v29, 7
    %vm174 = vcmask 1041409
    %v175 = vsel %vm174, %v173, %v28
    %v176 = vsel %vm53, %v175, 0
    %178 = vmatprep.subr.mxu0 0.0
    %179 = vmatpush1.msra.mxu0 %v32
    %180 = vmatprep.subr.mxu0 0.0
    %181 = vmatpush1.msra.mxu0 %v35
    %182 = vmatprep.subr.mxu0 0.0
    %183 = vmatpush1.msra.mxu0 %v38
    %184 = vmatprep.subr.mxu0 0.0
    %185 = vmatpush1.msra.mxu0 %v41
    %186 = vmatprep.subr.mxu0 0.0
    %187 = vmatpush1.msra.mxu0 0.0
    %188 = vmatprep.subr.mxu0 0.0
    %189 = vmatpush1.msra.mxu0 0.0
    %190 = vmatprep.subr.mxu0 0.0
    %191 = vmatpush1.msra.mxu0 0.0
    %192 = vmatprep.subr.mxu0 0.0
    %193 = vmatpush1.msra.mxu0 0.0
    %194 = vmatprep.subr.mxu0 0.0
    %195 = vmatpush1.msra.mxu0 0.0
    %196 = vmatprep.subr.mxu0 0.0
    %197 = vmatpush1.msra.mxu0 0.0
    %198 = vmatprep.subr.mxu0 0.0
    %199 = vmatpush1.msra.mxu0 0.0
    %200 = vmatprep.subr.mxu0 0.0
    %201 = vmatpush1.msra.mxu0 0.0
    %202 = vmatprep.subr.mxu0 0.0
    %203 = vmatpush1.msra.mxu0 0.0
    %204 = vmatprep.subr.mxu0 0.0
    %205 = vmatpush1.msra.mxu0 0.0
    %206 = vmatprep.subr.mxu0 0.0
    %207 = vmatpush1.msra.mxu0 0.0
    %208 = vmatprep.subr.mxu0 0.0
    %209 = vmatpush1.msra.mxu0 0.0
    %210 = vmatprep.subr.mxu0 0.0
    %211 = vmatpush1.msra.mxu0 0.0
    %212 = vmatprep.subr.mxu0 0.0
    %213 = vmatpush1.msra.mxu0 0.0
    %214 = vmatprep.subr.mxu0 0.0
    %215 = vmatpush1.msra.mxu0 0.0
    %216 = vmatprep.subr.mxu0 0.0
    %217 = vmatpush1.msra.mxu0 0.0
    %218 = vmatprep.subr.mxu0 0.0
    %219 = vmatpush1.msra.mxu0 0.0
    %220 = vmatprep.subr.mxu0 0.0
    %221 = vmatpush1.msra.mxu0 0.0
    %222 = vmatprep.subr.mxu0 0.0
    %223 = vmatpush1.msra.mxu0 0.0
    %224 = vmatprep.subr.mxu0 0.0
    %225 = vmatpush1.msra.mxu0 0.0
    %226 = vmatprep.subr.mxu0 0.0
    %227 = vmatpush1.msra.mxu0 0.0
    %228 = vmatprep.subr.mxu0 0.0
    %229 = vmatpush1.msra.mxu0 0.0
    %230 = vmatprep.subr.mxu0 0.0
    %231 = vmatpush1.msra.mxu0 0.0
    %232 = vmatprep.subr.mxu0 0.0
    %233 = vmatpush1.msra.mxu0 0.0
    %234 = vmatprep.subr.mxu0 0.0
    %235 = vmatpush1.msra.mxu0 0.0
    %236 = vmatprep.subr.mxu0 0.0
    %237 = vmatpush1.msra.mxu0 0.0
    %238 = vmatprep.subr.mxu0 0.0
    %239 = vmatpush1.msra.mxu0 0.0
    %240 = vmatprep.subr.mxu0 0.0
    %241 = vmatpush1.msra.mxu0 0.0
    %242 = vmatprep.mubr.f32.mxu0 0.0
    %243 = vmatmul.mubr.f32.gmra.mrb[0].mxu0 %v176
    %v244 = vpop.f32.mrb[0].mxu0
    %v245 = vadd.f32 %v170, %v244
    %v246 = vpop.f32.mrb[0].mxu0
    %247 = vdwg.mxu0
    %v248 = vtanh.pop %v245
    %v249 = vlaneseq
    %v250 = vshrl.u32 %v249, 7
    %v251 = vsub.s32 0, %v250
    %v252 = vrot.slane %v47, %v251
    %v254 = vsel %vm53, %v248, 0
    %256 = vmatprep.subr.mxu0 0.0
    %257 = vmatpush1.msra.mxu0 %v31
    %258 = vmatprep.subr.mxu0 0.0
    %259 = vmatpush1.msra.mxu0 %v34
    %260 = vmatprep.subr.mxu0 0.0
    %261 = vmatpush1.msra.mxu0 %v37
    %262 = vmatprep.subr.mxu0 0.0
    %263 = vmatpush1.msra.mxu0 %v40
    %264 = vmatprep.subr.mxu0 0.0
    %265 = vmatpush1.msra.mxu0 0.0
    %266 = vmatprep.subr.mxu0 0.0
    %267 = vmatpush1.msra.mxu0 0.0
    %268 = vmatprep.subr.mxu0 0.0
    %269 = vmatpush1.msra.mxu0 0.0
    %270 = vmatprep.subr.mxu0 0.0
    %271 = vmatpush1.msra.mxu0 0.0
    %272 = vmatprep.subr.mxu0 0.0
    %273 = vmatpush1.msra.mxu0 0.0
    %274 = vmatprep.subr.mxu0 0.0
    %275 = vmatpush1.msra.mxu0 0.0
    %276 = vmatprep.subr.mxu0 0.0
    %277 = vmatpush1.msra.mxu0 0.0
    %278 = vmatprep.subr.mxu0 0.0
    %279 = vmatpush1.msra.mxu0 0.0
    %280 = vmatprep.subr.mxu0 0.0
    %281 = vmatpush1.msra.mxu0 0.0
    %282 = vmatprep.subr.mxu0 0.0
    %283 = vmatpush1.msra.mxu0 0.0
    %284 = vmatprep.subr.mxu0 0.0
    %285 = vmatpush1.msra.mxu0 0.0
    %286 = vmatprep.subr.mxu0 0.0
    %287 = vmatpush1.msra.mxu0 0.0
    %288 = vmatprep.subr.mxu0 0.0
    %289 = vmatpush1.msra.mxu0 0.0
    %290 = vmatprep.subr.mxu0 0.0
    %291 = vmatpush1.msra.mxu0 0.0
    %292 = vmatprep.subr.mxu0 0.0
    %293 = vmatpush1.msra.mxu0 0.0
    %294 = vmatprep.subr.mxu0 0.0
    %295 = vmatpush1.msra.mxu0 0.0
    %296 = vmatprep.subr.mxu0 0.0
    %297 = vmatpush1.msra.mxu0 0.0
    %298 = vmatprep.subr.mxu0 0.0
    %299 = vmatpush1.msra.mxu0 0.0
    %300 = vmatprep.subr.mxu0 0.0
    %301 = vmatpush1.msra.mxu0 0.0
    %302 = vmatprep.subr.mxu0 0.0
    %303 = vmatpush1.msra.mxu0 0.0
    %304 = vmatprep.subr.mxu0 0.0
    %305 = vmatpush1.msra.mxu0 0.0
    %306 = vmatprep.subr.mxu0 0.0
    %307 = vmatpush1.msra.mxu0 0.0
    %308 = vmatprep.subr.mxu0 0.0
    %309 = vmatpush1.msra.mxu0 0.0
    %310 = vmatprep.subr.mxu0 0.0
    %311 = vmatpush1.msra.mxu0 0.0
    %312 = vmatprep.subr.mxu0 0.0
    %313 = vmatpush1.msra.mxu0 0.0
    %314 = vmatprep.subr.mxu0 0.0
    %315 = vmatpush1.msra.mxu0 0.0
    %316 = vmatprep.subr.mxu0 0.0
    %317 = vmatpush1.msra.mxu0 0.0
    %318 = vmatprep.subr.mxu0 0.0
    %319 = vmatpush1.msra.mxu0 0.0
    %320 = vmatprep.mubr.f32.mxu0 0.0
    %321 = vmatmul.mubr.f32.gmra.mrb[0].mxu0 %v254
    %v322 = vpop.f32.mrb[0].mxu0
    %v323 = vadd.f32 %v252, %v322
    %v324 = vpop.f32.mrb[0].mxu0
    %325 = vdwg.mxu0
    %v326 = vlaneseq
    %v327 = vand.u32 %v326, 127
    %vm328 = vcmp.ge.s32.totalorder %v327, 0
    %vm329 = vcmp.lt.s32.totalorder %v327, 7
    %vm330 = vmand %vm328, %vm329
    %v331 = vsel %vm330, %v159, -1e+30
    %v332 = vsel %vm330, %v164, -1e+30
    %333 = vmax.xlane.f32.xlu0 %v331
    %v334 = vpop.xlane.xlu0 %333
    %335 = vmax.xlane.f32.xlu0 %v332
    %v336 = vpop.xlane.xlu0 %335
    %v337 = vsub.f32 %v159, %v334
    %v338 = vsub.f32 %v164, %v336
    %v339 = vmul.f32 %v337, 1.442695
    %v340 = vpow.pop %v339
    %v341 = vmul.f32 %v338, 1.442695
    %v342 = vpow.pop %v341
    %v343 = vsel %vm330, %v340, 0.0
    %v344 = vsel %vm330, %v342, 0.0
    %345 = vadd.xlane.f32.xlu0 %v343
    %v346 = vpop.xlane.xlu0 %345
    %347 = vadd.xlane.f32.xlu0 %v344
    %v348 = vpop.xlane.xlu0 %347
    %v349 = vlog2.pop %v346
    %v350 = vmul.f32 %v349, 0.6931472
    %v351 = vlog2.pop %v348
    %v352 = vmul.f32 %v351, 0.6931472
    %v353 = vadd.f32 %v334, %v350
    %v354 = vadd.f32 %v336, %v352
    %355 = vset.pattern.permute.xlu0 0
    %356 = vperm.xlu0 %355, %v49
    %v357 = vpop.permute.xlu0 %356
    %358 = vset.pattern.permute.xlu0 0
    %359 = vperm.xlu0 %358, %v50
    %v360 = vpop.permute.xlu0 %359
    %vm361 = vcmp.eq.s32.totalorder %v327, %v357
    %vm362 = vcmp.eq.s32.totalorder %v327, %v360
    %v363 = vsel %vm361, 1, 0
    %v364 = vsel %vm362, 1, 0
    %v365 = vcvt.s32.f32 %v363
    %v366 = vcvt.s32.f32 %v364
    %v367 = vsub.f32 %v159, %v353
    %v368 = vsub.f32 %v164, %v354
    %v369 = vmul.f32 %v365, %v367
    %v370 = vmul.f32 %v366, %v368
    %371 = vadd.xlane.f32.xlu0 %v369
    %v372 = vpop.xlane.xlu0 %371
    %373 = vadd.xlane.f32.xlu0 %v370
    %v374 = vpop.xlane.xlu0 %373
    %v375 = vsub.f32 0.0, %v372
    %v376 = vsub.f32 0.0, %v374
    %vm377 = vcmp.ne.s32.totalorder %v49, 4294967196
    %vm378 = vcmp.ne.s32.totalorder %v50, 4294967196
    %v379 = vsel %vm377, 1, 0
    %v380 = vsel %vm378, 1, 0
    %v381 = vcvt.s32.f32 %v379
    %v382 = vcvt.s32.f32 %v380
    %v383 = vmul.f32 %v375, %v381
    %v384 = vmul.f32 %v376, %v382
    %vm385 = vcmask 7168
    %v386 = vsel %vm385, %v383, 0.0
    %v387 = vsel %vm385, %v384, 0.0
    %v388 = vadd.f32 %v386, %v387
    %v389 = vrot.slane %v388, 4
    %v390 = vadd.f32 %v388, %v389
    %v391 = vrot.slane %v390, 2
    %v392 = vadd.f32 %v390, %v391
    %v393 = vrot.slane %v392, 1
    %v394 = vadd.f32 %v392, %v393
    %v395 = vsel %vm385, %v381, 0.0
    %v396 = vsel %vm385, %v382, 0.0
    %v397 = vadd.f32 %v395, %v396
    %v398 = vrot.slane %v397, 4
    %v399 = vadd.f32 %v397, %v398
    %v400 = vrot.slane %v399, 2
    %v401 = vadd.f32 %v399, %v400
    %v402 = vrot.slane %v401, 1
    %v403 = vadd.f32 %v401, %v402
    %v404 = vrcp.pop %v403
    %v405 = vmul.f32 %v394, %v404
    %vm406 = vcmp.lt.s32.totalorder %v327, 6
    %vm407 = vmand %vm328, %vm406
    %v408 = vsel %vm407, %v323, -1e+30
    %vm409 = vcmask 1041408
    %v410 = vsel %vm409, %v408, -inf
    %411 = vmax.xlane.f32.xlu0 %v410
    %v412 = vpop.xlane.xlu0 %411
    %v413 = vsub.f32 %v323, %v412
    %v414 = vmul.f32 %v413, 1.442695
    %v415 = vpow.pop %v414
    %v416 = vsel %vm407, %v415, 0.0
    %v417 = vsel %vm409, %v416, 0.0
    %418 = vadd.xlane.f32.xlu0 %v417
    %v419 = vpop.xlane.xlu0 %418
    %v420 = vlog2.pop %v419
    %v421 = vmul.f32 %v420, 0.6931472
    %v422 = vadd.f32 %v412, %v421
    %423 = vset.pattern.permute.xlu0 0
    %424 = vperm.xlu0 %423, %v51
    %v425 = vpop.permute.xlu0 %424
    %vm426 = vcmp.eq.s32.totalorder %v327, %v425
    %v427 = vsel %vm426, 1, 0
    %v428 = vcvt.s32.f32 %v427
    %v429 = vsub.f32 %v323, %v422
    %v430 = vmul.f32 %v428, %v429
    %v431 = vsel %vm409, %v430, 0.0
    %432 = vadd.xlane.f32.xlu0 %v431
    %v433 = vpop.xlane.xlu0 %432
    %v434 = vsub.f32 0.0, %v433
    %v435 = vsub.f32 0.0, %v434
    %v436 = vmul.f32 %v435, 1.442695
    %v437 = vpow.pop %v436
    %v438 = vsub.f32 1.0, %v437
    %v439 = vmul.f32 %v438, 0.25
    %v440 = vmul.f32 %v439, %v438
    %v441 = vmul.f32 %v440, %v434
    %v442 = vsel %vm409, %v441, 0.0
    %v443 = vrot.slane %v442, 4
    %v444 = vadd.f32 %v442, %v443
    %v445 = vrot.slane %v444, 2
    %v446 = vadd.f32 %v444, %v445
    %v447 = vrot.slane %v446, 1
    %v448 = vadd.f32 %v446, %v447
    %v449 = vrcp.pop 2.0
    %v450 = vmul.f32 %v448, %v449
    %vm451 = vcmp.ge.s32.totalorder %v327, 6
    %vm452 = vcmp.lt.s32.totalorder %v327, 8
    %vm453 = vmand %vm451, %vm452
    %v454 = vsel %vm453, %v323, -1e+30
    %v455 = vsel %vm409, %v454, -inf
    %456 = vmax.xlane.f32.xlu0 %v455
    %v457 = vpop.xlane.xlu0 %456
    %v458 = vsub.f32 %v323, %v457
    %v459 = vmul.f32 %v458, 1.442695
    %v460 = vpow.pop %v459
    %v461 = vsel %vm453, %v460, 0.0
    %v462 = vsel %vm409, %v461, 0.0
    %463 = vadd.xlane.f32.xlu0 %v462
    %v464 = vpop.xlane.xlu0 %463
    %v465 = vlog2.pop %v464
    %v466 = vmul.f32 %v465, 0.6931472
    %v467 = vadd.f32 %v457, %v466
    %v468 = vadd.s32 %v52, 6
    %469 = vset.pattern.permute.xlu0 0
    %470 = vperm.xlu0 %469, %v468
    %v471 = vpop.permute.xlu0 %470
    %vm472 = vcmp.eq.s32.totalorder %v327, %v471
    %v473 = vsel %vm472, 1, 0
    %v474 = vcvt.s32.f32 %v473
    %v475 = vsub.f32 %v323, %v467
    %v476 = vmul.f32 %v474, %v475
    %v477 = vsel %vm409, %v476, 0.0
    %478 = vadd.xlane.f32.xlu0 %v477
    %v479 = vpop.xlane.xlu0 %478
    %v480 = vsub.f32 0.0, %v479
    %v481 = vsub.f32 0.0, %v480
    %v482 = vmul.f32 %v481, 1.442695
    %v483 = vpow.pop %v482
    %v484 = vsub.f32 1.0, %v483
    %v485 = vmul.f32 %v484, 0.25
    %v486 = vmul.f32 %v485, %v484
    %v487 = vmul.f32 %v486, %v480
    %v488 = vsel %vm409, %v487, 0.0
    %v489 = vrot.slane %v488, 4
    %v490 = vadd.f32 %v488, %v489
    %v491 = vrot.slane %v490, 2
    %v492 = vadd.f32 %v490, %v491
    %v493 = vrot.slane %v492, 1
    %v494 = vadd.f32 %v492, %v493
    %v495 = vmul.f32 %v494, %v449
    %v496 = vadd.f32 %v405, %v450
    %v497 = vmul.f32 %v495, 2.0
    %v498 = vadd.f32 %v496, %v497
    %vm499 = vcmp.eq.s32.totalorder %v327, 0
    %v500 = vsel %vm499, 1, 0
    %v501 = vcvt.s32.f32 %v500
    %503 = vset.pattern.permute.xlu0 0
    %504 = vperm.xlu0 %503, %v405
    %v505 = vpop.permute.xlu0 %504
    %v507 = vmul.f32 %v505, %v501
    %vm508 = vcmp.eq.s32.totalorder %v327, 1
    %v509 = vsel %vm508, 1, 0
    %v510 = vcvt.s32.f32 %v509
    %v511 = vmul.f32 %v450, %v510
    %v512 = vadd.f32 %v507, %v511
    %vm513 = vcmp.eq.s32.totalorder %v327, 2
    %v514 = vsel %vm513, 1, 0
    %v515 = vcvt.s32.f32 %v514
    %v516 = vmul.f32 %v495, %v515
    %v517 = vadd.f32 %v512, %v516
    %vm518 = vcmp.eq.s32.totalorder %v327, 3
    %v519 = vsel %vm518, 1, 0
    %v520 = vcvt.s32.f32 %v519
    %522 = vset.pattern.permute.xlu0 0
    %523 = vperm.xlu0 %522, %v498
    %v524 = vpop.permute.xlu0 %523
    %v526 = vmul.f32 %v524, %v520
    %v527 = vadd.f32 %v517, %v526
    %528 = vst [vmem:[%s3] sm:$0xff] 0.0
    %529 = vst [vmem:[%s3 + $0x8] sm:$0xff] 0.0
    %530 = vst [vmem:[%s3 + $0x10] sm:$0xff] 0.0
    %531 = vst [vmem:[%s3 + $0x18] sm:$0xff] 0.0
    %532 = vst [vmem:[%s3] sm:$0xff] %v159
    %533 = vst [vmem:[%s3 + $0x8] sm:$0xff] %v164
    %534 = vst [vmem:[%s3 + $0x10] sm:$0x3] %v323
    %535 = vst [vmem:[%s3 + $0x18] sm:$0x1] %v527
    // Predicated region
    $region18: #{run_model.1} parent=1 // pred_check
      _
    $region19: #{run_model.1} parent=1 // pred_check_branch
      %537 = sbr.rel (0) target = $region21
    $region20: #{run_model.1} parent=1 // pred_region
      _
    $region21: #{run_model.1} parent=1 // pred_fallthru
      _
    // Predicated region
    $region22: #{run_model.1} parent=1 // pred_check
      _
    $region23: #{run_model.1} parent=1 // pred_check_branch
      %539 = sbr.rel (0) target = $region25
    $region24: #{run_model.1} parent=1 // pred_region
      _
    $region25: #{run_model.1} parent=1 // pred_fallthru
      _
    %540 = vsyncpa [#allocation3], 1

</llo_original>
